<compile_context>
chip_gen: v6e
topology: v6e:2x2x1
jax: 0.10.0
libtpu: 0.0.40
codegen_flags: <defaults>
</compile_context>

<pallas_src>
import math
from functools import partial

import numpy as np
import jax
import jax.numpy as jnp
from jax.experimental import pallas as pl
from jax.experimental.pallas import tpu as pltpu


def _linear_kernel(x_ref, w_ref, b_ref, o_ref, acc_ref, *, inv_sqrt_n_in):
    """One (i, j, k) grid step of  X @ (W / sqrt(n_in)) + b."""
    k = pl.program_id(2)

    @pl.when(k == 0)
    def _():
        acc_ref[...] = jnp.zeros_like(acc_ref)

    # Native-dtype tiles to the MXU; f32 accumulation via preferred_element_type.
    acc_ref[...] += jnp.dot(x_ref[...], w_ref[...],
                            preferred_element_type=jnp.float32)

    @pl.when(k == pl.num_programs(2) - 1)
    def _():
        # Scale once in the epilogue (instead of scaling W every K step).
        o_ref[...] = (acc_ref[...] * inv_sqrt_n_in
                      + b_ref[...].astype(jnp.float32)).astype(o_ref.dtype)


def _pick_tile(dim, target, align):
    """Largest divisor of `dim` that is a multiple of `align` and <= `target`;
    falls back to the full dimension (always a legal block shape)."""
    if dim <= target or dim % align != 0:
        return dim
    t = (target // align) * align
    while t >= align:
        if dim % t == 0:
            return t
        t -= align
    return dim


def sharma_fix_linear(x, w, b, *, tm=None, tn=None, tk=None, w_buffers=None):
    """Pallas tiled matmul + bias:  x @ (w / sqrt(n_in)) + b."""
    M, K = x.shape
    K2, N = w.shape
    assert K == K2 and b.shape == (N,)

    # 128-lane aligned tiles (256/512-friendly for v6e/v7x MXUs); small shapes
    # fall back to full-array blocks.
    tm = _pick_tile(M, 256, 8) if tm is None else tm
    tn = _pick_tile(N, 512, 128) if tn is None else tn
    tk = _pick_tile(K, 512, 128) if tk is None else tk
    assert M % tm == 0 and N % tn == 0 and K % tk == 0

    inv = 1.0 / math.sqrt(K)
    b2 = b.reshape(1, N)
    dsize = x.dtype.itemsize

    # VMEM budget: double-buffered input tiles + double-buffered output tile
    # + f32 accumulator scratch.  Kept well under v7x's 64 MiB physical VMEM.
    tile_bytes = (2 * (tm * tk + tk * tn + tn) * dsize    # pipelined inputs
                  + 2 * tm * tn * dsize                   # pipelined output
                  + tm * tn * 4)                          # f32 accumulator
    vmem_limit = int(min(max(2 * tile_bytes, 32 << 20), 48 << 20))

    # Optional: deeper pipelining of the K-streamed W operand for small-M,
    # HBM-streaming shapes.  Off by default (opt in via w_buffers=3).
    w_spec_kwargs = {}
    if w_buffers is not None and w_buffers > 2 and (K // tk) >= w_buffers:
        w_spec_kwargs["pipeline_mode"] = pl.Buffered(w_buffers)

    kernel = partial(_linear_kernel, inv_sqrt_n_in=inv)
    return pl.pallas_call(
        kernel,
        out_shape=jax.ShapeDtypeStruct((M, N), x.dtype),
        grid_spec=pltpu.PrefetchScalarGridSpec(
            num_scalar_prefetch=0,
            grid=(M // tm, N // tn, K // tk),
            in_specs=[pl.BlockSpec((tm, tk), lambda i, j, k: (i, k)),
                      pl.BlockSpec((tk, tn), lambda i, j, k: (k, j),
                                   **w_spec_kwargs),
                      pl.BlockSpec((1, tn), lambda i, j, k: (0, j))],
            out_specs=pl.BlockSpec((tm, tn), lambda i, j, k: (i, j)),
            scratch_shapes=[pltpu.VMEM((tm, tn), jnp.float32)]),
        compiler_params=pltpu.CompilerParams(
            dimension_semantics=("parallel", "parallel", "arbitrary"),
            vmem_limit_bytes=vmem_limit),
        cost_estimate=pl.CostEstimate(
            flops=2 * M * N * K,
            transcendentals=0,
            bytes_accessed=(M * K + K * N + N + M * N) * dsize),
    )(x, w, b2)


def build_fixed_weight(fc1_W, w_free):
    """Parameter glue for the fc1_W / num_fix_ratio=0.5 path.

    Replaces the entries of fc1_W whose |value| is strictly above the
    (torch-style lower) median with the trainable vector w_free (row-major
    order), matching `new_W[self.sampling_indices] = self.W`.
    """
    fc1_np = np.asarray(fc1_W)
    abs_w = np.abs(fc1_np)
    flat_sorted = np.sort(abs_w.ravel())
    med = flat_sorted[(flat_sorted.size - 1) // 2]      # torch lower-median
    mask = abs_w > med
    assert int(mask.sum()) == w_free.shape[0]
    idx = np.cumsum(mask.ravel()) - 1                   # position within w_free
    gathered = jnp.asarray(w_free)[jnp.asarray(idx)]
    new_flat = jnp.where(jnp.asarray(mask.ravel()),
                         gathered,
                         jnp.asarray(fc1_np).ravel())
    return new_flat.reshape(fc1_np.shape)


if __name__ == "__main__":
    key = jax.random.PRNGKey(0)
    kx, kw, kf, kwf, kx2, kw2, kb2 = jax.random.split(key, 7)

    # ---- Path 1: fc1_W is None (full trainable W), module-native shape -----
    B, n_in, n_out = 8, 32, 32
    x = jax.random.normal(kx, (B, n_in), jnp.float32)
    W = jax.random.normal(kw, (n_in, n_out), jnp.float32)   # init.normal_(W, 0, 1)
    b = jnp.zeros((n_out,), jnp.float32)                     # init.constant_(b, 0)
    out = sharma_fix_linear(x, W, b)
    jax.block_until_ready(out)
    ref = np.asarray(x) @ (np.asarray(W) / math.sqrt(n_in)) + np.asarray(b)
    np.testing.assert_allclose(np.asarray(out), ref, rtol=1e-5, atol=1e-5)

    # ---- Path 2: fc1_W given, num_fix_ratio=0.5 (half the weights frozen) --
    fc1_W = jax.random.normal(kf, (n_in, n_out), jnp.float32)
    abs_w = np.abs(np.asarray(fc1_W))
    med = np.sort(abs_w.ravel())[(abs_w.size - 1) // 2]
    n_free = int((abs_w > med).sum())
    w_free = jax.random.normal(kwf, (n_free,), jnp.float32)  # trainable half
    W_eff = build_fixed_weight(fc1_W, w_free)
    out2 = sharma_fix_linear(x, W_eff, b)
    jax.block_until_ready(out2)
    ref2 = np.asarray(x) @ (np.asarray(W_eff) / math.sqrt(n_in)) + np.asarray(b)
    np.testing.assert_allclose(np.asarray(out2), ref2, rtol=1e-5, atol=1e-5)

    # ---- Tiled multi-block path (K accumulation + pipelining + epilogue) ---
    M, K, N = 128, 256, 256
    x3 = jax.random.normal(kx2, (M, K), jnp.float32)
    W3 = jax.random.normal(kw2, (K, N), jnp.float32)
    b3 = jax.random.normal(kb2, (N,), jnp.float32)
    out3 = sharma_fix_linear(x3, W3, b3, tm=64, tn=128, tk=128)
    jax.block_until_ready(out3)
    ref3 = np.asarray(x3) @ (np.asarray(W3) / math.sqrt(K)) + np.asarray(b3)
    np.testing.assert_allclose(np.asarray(out3), ref3, rtol=1e-5, atol=1e-5)

    # ---- Native bf16 path (bf16 tiles on the MXU, f32 accumulation) --------
    xb, Wb, bb = (x3.astype(jnp.bfloat16), W3.astype(jnp.bfloat16),
                  b3.astype(jnp.bfloat16))
    out4 = sharma_fix_linear(xb, Wb, bb)
    jax.block_until_ready(out4)
    ref4 = (np.asarray(xb.astype(jnp.float32))
            @ (np.asarray(Wb.astype(jnp.float32)) / math.sqrt(K))
            + np.asarray(bb.astype(jnp.float32)))
    np.testing.assert_allclose(np.asarray(out4.astype(jnp.float32)), ref4,
                               rtol=2e-2, atol=2e-2)

    print("KERNEL_OK")
</pallas_src>

<mosaic_0001>
module attributes {stable_mosaic.version = 11 : i64} {
  func.func @_linear_kernel(%arg0: i32, %arg1: i32, %arg2: i32, %arg3: memref<8x32xf32, #tpu.memory_space<vmem>>, %arg4: memref<32x32xf32, #tpu.memory_space<vmem>>, %arg5: memref<1x32xf32, #tpu.memory_space<vmem>>, %arg6: memref<8x32xf32, #tpu.memory_space<vmem>>, %arg7: memref<8x32xf32, #tpu.memory_space<vmem>>) attributes {dimension_semantics = [#tpu.dimension_semantics<parallel>, #tpu.dimension_semantics<parallel>, #tpu.dimension_semantics<arbitrary>], iteration_bounds = array<i64: 1, 1, 1>, scalar_prefetch = 0 : i64, scratch_operands = 1 : i64, tpu.core_type = #tpu.core_type<tc>, window_params = [{transform_indices = @transform_0, window_bounds = array<i64: 8, 32>}, {transform_indices = @transform_1, window_bounds = array<i64: 32, 32>}, {transform_indices = @transform_2, window_bounds = array<i64: 1, 32>}, {transform_indices = @transform_3, window_bounds = array<i64: 8, 32>}]} {
    %c0_i32 = arith.constant 0 : i32
    %0 = arith.cmpi eq, %arg2, %c0_i32 : i32
    %1 = arith.extui %0 : i1 to i32
    %c0_i32_0 = arith.constant 0 : i32
    %2 = arith.cmpi ne, %1, %c0_i32_0 : i32
    scf.if %2 {
      %cst_10 = arith.constant 0.000000e+00 : f32
      %12 = vector.broadcast %cst_10 : f32 to vector<8x32xf32>
      %c0_11 = arith.constant 0 : index
      %c0_12 = arith.constant 0 : index
      %13 = vector.load %arg7[%c0_11, %c0_12] : memref<8x32xf32, #tpu.memory_space<vmem>>, vector<8x32xf32>
      tpu.vector_store %arg7[%c0_11, %c0_12], %12 {strides = array<i32>} : memref<8x32xf32, #tpu.memory_space<vmem>>, vector<8x32xf32>,
    } else {
    }
    %c0 = arith.constant 0 : index
    %c0_1 = arith.constant 0 : index
    %3 = vector.load %arg7[%c0, %c0_1] : memref<8x32xf32, #tpu.memory_space<vmem>>, vector<8x32xf32>
    %c0_2 = arith.constant 0 : index
    %c0_3 = arith.constant 0 : index
    %4 = vector.load %arg3[%c0_2, %c0_3] : memref<8x32xf32, #tpu.memory_space<vmem>>, vector<8x32xf32>
    %c0_4 = arith.constant 0 : index
    %c0_5 = arith.constant 0 : index
    %5 = vector.load %arg4[%c0_4, %c0_5] : memref<32x32xf32, #tpu.memory_space<vmem>>, vector<32x32xf32>
    %cst = arith.constant dense<0.000000e+00> : vector<8x32xf32>
    %6 = tpu.matmul %4, %5, %cst {dimension_numbers = #tpu.dot_dimension_numbers<[1], [0], [0], [1], [0, 0, 1, 1], [], []>} : vector<8x32xf32>, vector<32x32xf32>, vector<8x32xf32> -> vector<8x32xf32>
    %7 = arith.addf %3, %6 : vector<8x32xf32>
    %c0_6 = arith.constant 0 : index
    %c0_7 = arith.constant 0 : index
    %8 = vector.load %arg7[%c0_6, %c0_7] : memref<8x32xf32, #tpu.memory_space<vmem>>, vector<8x32xf32>
    tpu.vector_store %arg7[%c0_6, %c0_7], %7 {strides = array<i32>} : memref<8x32xf32, #tpu.memory_space<vmem>>, vector<8x32xf32>,
    %c0_i32_8 = arith.constant 0 : i32
    %9 = arith.cmpi eq, %arg2, %c0_i32_8 : i32
    %10 = arith.extui %9 : i1 to i32
    %c0_i32_9 = arith.constant 0 : i32
    %11 = arith.cmpi ne, %10, %c0_i32_9 : i32
    scf.if %11 {
      %c0_10 = arith.constant 0 : index
      %c0_11 = arith.constant 0 : index
      %12 = vector.load %arg7[%c0_10, %c0_11] : memref<8x32xf32, #tpu.memory_space<vmem>>, vector<8x32xf32>
      %cst_12 = arith.constant 0.176776692 : f32
      %13 = vector.broadcast %cst_12 : f32 to vector<8x32xf32>
      %14 = arith.mulf %12, %13 : vector<8x32xf32>
      %c0_13 = arith.constant 0 : index
      %c0_14 = arith.constant 0 : index
      %15 = vector.load %arg5[%c0_13, %c0_14] : memref<1x32xf32, #tpu.memory_space<vmem>>, vector<1x32xf32>
      %16 = vector.broadcast %15 : vector<1x32xf32> to vector<8x32xf32>
      %17 = arith.addf %14, %16 : vector<8x32xf32>
      %c0_15 = arith.constant 0 : index
      %c0_16 = arith.constant 0 : index
      %18 = vector.load %arg6[%c0_15, %c0_16] : memref<8x32xf32, #tpu.memory_space<vmem>>, vector<8x32xf32>
      tpu.vector_store %arg6[%c0_15, %c0_16], %17 {strides = array<i32>} : memref<8x32xf32, #tpu.memory_space<vmem>>, vector<8x32xf32>,
    } else {
    }
    return
  }
  func.func @transform_0(%arg0: i32, %arg1: i32, %arg2: i32) -> (i32, i32) {
    %c0_i32 = arith.constant 0 : i32
    return %arg0, %arg2 : i32, i32
  }
  func.func @transform_1(%arg0: i32, %arg1: i32, %arg2: i32) -> (i32, i32) {
    %c0_i32 = arith.constant 0 : i32
    return %arg2, %arg1 : i32, i32
  }
  func.func @transform_2(%arg0: i32, %arg1: i32, %arg2: i32) -> (i32, i32) {
    %c0_i32 = arith.constant 0 : i32
    %c0_i32_0 = arith.constant 0 : i32
    return %c0_i32, %arg1 : i32, i32
  }
  func.func @transform_3(%arg0: i32, %arg1: i32, %arg2: i32) -> (i32, i32) {
    %c0_i32 = arith.constant 0 : i32
    return %arg0, %arg1 : i32, i32
  }
}

</mosaic_0001>

<llo_original>
// kernel: tpu_custom_call.1
$region0: #{tpu_custom_call.1}
  #allocation0 [shape = 'u32[]', space=smem, size = 0x4, offset = 0x4, fixed_abs, tag = 'smem constant byte address 0x4 - core index']
  #allocation1 [shape = 'u32[144,128]{1,0:T(1,128)}', space=vmem, size = 0x12000, scoped, tag = 'internal scratch']
  #allocation2 [shape = 'f32[8,32]{1,0:T(8,128)}', space=vmem, size = 0x1000, scoped, tag = 'scratch operand']
  %s0 = inlined_call_operand.hbm [shape: f32[8,32], index: 0, kind: input, shape index: {}]
  %s1 = inlined_call_operand.hbm [shape: f32[32,32], index: 1, kind: input, shape index: {}]
  %s2 = inlined_call_operand.vmem [shape: f32[1,32], index: 2, kind: input, shape index: {}]
  %s3 = inlined_call_operand.hbm [shape: f32[8,32], index: 3, kind: output, shape index: {}]
  %s4 = sld [smem:[#allocation0]]
  $region38: #{tpu_custom_call.1} parent=0
    _
  %s6 = ssub.s32 1, %s4
  %s7 = scalar_select 0, %s6, %s4
  $region1: #{tpu_custom_call.1} parent=0
    #allocation3 [shape = 'u8[4096]{0}', space=vmem, size = 0x1000, scoped, tag = 'input window, operand 0, single buffered']
    #allocation4 [shape = 's32[1]{0}', space=sflag, size = 0x4, scoped, tag = 'scoped memory for tpu_custom_call.1']
    #allocation5 [shape = 's32[1]{0}', space=sflag, size = 0x4, scoped, tag = 'scoped memory for tpu_custom_call.1']
    #allocation6 [shape = 'u8[16384]{0}', space=vmem, size = 0x4000, scoped, tag = 'input window, operand 1, single buffered']
    #allocation7 [shape = 's32[1]{0}', space=sflag, size = 0x4, scoped, tag = 'scoped memory for tpu_custom_call.1']
    #allocation8 [shape = 'u8[4096]{0}', space=vmem, size = 0x1000, scoped, tag = 'output window, operand 0, single buffered']
    %8 = vsyncpa [#allocation4], 0
    %9 = vsyncpa [#allocation7], 0
    %10 = vsyncpa [#allocation5], 0
    // Predicated region
    $region2: #{tpu_custom_call.1} parent=1 // pred_check
      _
    $region3: #{tpu_custom_call.1} parent=1 // pred_check_branch
      %12 = sbr.rel (0) target = $region5
    $region4: #{tpu_custom_call.1} parent=1 // pred_region
      %s14 = ssub.s32 128, 128
      %15 = vsyncadd [#allocation4], %s14
      %s17 = sshll.u32 [#allocation3], 4
      %s18 = int_to_ptr.vmem [resolvable:$true] %s17
      %20 = dma.hbm_to_vmem [thread:$0]  %s0, 128, %s18, [#allocation4]
    $region5: #{tpu_custom_call.1} parent=1 // pred_fallthru
      _
    // Predicated region
    $region6: #{tpu_custom_call.1} parent=1 // pred_check
      _
    $region7: #{tpu_custom_call.1} parent=1 // pred_check_branch
      %22 = sbr.rel (0) target = $region9
    $region8: #{tpu_custom_call.1} parent=1 // pred_region
      %s24 = ssub.s32 512, 512
      %25 = vsyncadd [#allocation7], %s24
      %s26 = sshll.u32 [#allocation6], 4
      %s27 = int_to_ptr.vmem [resolvable:$true] %s26
      %32 = dma.hbm_to_vmem [thread:$0]  %s1, 512, %s27, [#allocation7], 128, 128, 8
    $region9: #{tpu_custom_call.1} parent=1 // pred_fallthru
      _
    // Predicated region
    $region10: #{tpu_custom_call.1} parent=1 // pred_check
      _
    $region11: #{tpu_custom_call.1} parent=1 // pred_check_branch
      %34 = sbr.rel (0) target = $region13
    $region12: #{tpu_custom_call.1} parent=1 // pred_region
      _
    $region13: #{tpu_custom_call.1} parent=1 // pred_fallthru
      _
    // Predicated region
    $region14: #{tpu_custom_call.1} parent=1 // pred_check
      _
    $region15: #{tpu_custom_call.1} parent=1 // pred_check_branch
      %36 = sbr.rel (0) target = $region17
    $region16: #{tpu_custom_call.1} parent=1 // pred_region
      %37 = dma.done [#allocation4], 128
    $region17: #{tpu_custom_call.1} parent=1 // pred_fallthru
      _
    // Predicated region
    $region18: #{tpu_custom_call.1} parent=1 // pred_check
      _
    $region19: #{tpu_custom_call.1} parent=1 // pred_check_branch
      %39 = sbr.rel (0) target = $region21
    $region20: #{tpu_custom_call.1} parent=1 // pred_region
      %40 = dma.done [#allocation7], 512
    $region21: #{tpu_custom_call.1} parent=1 // pred_fallthru
      _
    %p41 = scmp.eq.s32.totalorder 0, 0
    // Predicated region
    $region22: #{tpu_custom_call.1} parent=1 // pred_check
      %p42 = pneg %p41
    $region23: #{tpu_custom_call.1} parent=1 // pred_check_branch
      %44 = sbr.rel (%p42) target = $region25
    $region24: #{tpu_custom_call.1} parent=1 // pred_region
      %vm45 = vcmask 261120
      %46 = vst.msk [vmem:[#allocation2] sm:$0xff] %vm45, 0.0
    $region25: #{tpu_custom_call.1} parent=1 // pred_fallthru
      _
    %v47 = vld [vmem:[#allocation2] sm:$0xff]
    %v48 = vld [vmem:[#allocation3] sm:$0xff]
    %v49 = vld [vmem:[#allocation6] sm:$0xff]
    %v50 = vld [vmem:[#allocation6 + $0x8] sm:$0xff]
    %v51 = vld [vmem:[#allocation6 + $0x10] sm:$0xff]
    %v52 = vld [vmem:[#allocation6 + $0x18] sm:$0xff]
    %vm53 = vcmask 261120
    %v55 = vsel %vm53, %v48, 0
    %57 = vmatprep.subr.mxu0 0.0
    %58 = vmatpush1.msra.mxu0 0.0
    %59 = vmatprep.subr.mxu0 0.0
    %60 = vmatpush1.msra.mxu0 0.0
    %61 = vmatprep.subr.mxu0 0.0
    %62 = vmatpush1.msra.mxu0 0.0
    %63 = vmatprep.subr.mxu0 0.0
    %64 = vmatpush1.msra.mxu0 0.0
    %65 = vmatprep.subr.mxu0 0.0
    %66 = vmatpush1.msra.mxu0 0.0
    %67 = vmatprep.subr.mxu0 0.0
    %68 = vmatpush1.msra.mxu0 0.0
    %69 = vmatprep.subr.mxu0 0.0
    %70 = vmatpush1.msra.mxu0 0.0
    %71 = vmatprep.subr.mxu0 0.0
    %72 = vmatpush1.msra.mxu0 0.0
    %73 = vmatprep.subr.mxu0 0.0
    %74 = vmatpush1.msra.mxu0 0.0
    %75 = vmatprep.subr.mxu0 0.0
    %76 = vmatpush1.msra.mxu0 0.0
    %77 = vmatprep.subr.mxu0 0.0
    %78 = vmatpush1.msra.mxu0 0.0
    %79 = vmatprep.subr.mxu0 0.0
    %80 = vmatpush1.msra.mxu0 0.0
    %81 = vmatprep.subr.mxu0 0.0
    %82 = vmatpush1.msra.mxu0 %v52
    %83 = vmatprep.subr.mxu0 0.0
    %84 = vmatpush1.msra.mxu0 %v51
    %85 = vmatprep.subr.mxu0 0.0
    %86 = vmatpush1.msra.mxu0 %v50
    %87 = vmatprep.subr.mxu0 0.0
    %88 = vmatpush1.msra.mxu0 %v49
    %89 = vmatprep.subr.mxu0 0.0
    %90 = vmatpush2.msra.mxu0 0.0
    %91 = vmatprep.subr.mxu0 0.0
    %92 = vmatpush2.msra.mxu0 0.0
    %93 = vmatprep.subr.mxu0 0.0
    %94 = vmatpush2.msra.mxu0 0.0
    %95 = vmatprep.subr.mxu0 0.0
    %96 = vmatpush2.msra.mxu0 0.0
    %97 = vmatprep.subr.mxu0 0.0
    %98 = vmatpush2.msra.mxu0 0.0
    %99 = vmatprep.subr.mxu0 0.0
    %100 = vmatpush2.msra.mxu0 0.0
    %101 = vmatprep.subr.mxu0 0.0
    %102 = vmatpush2.msra.mxu0 0.0
    %103 = vmatprep.subr.mxu0 0.0
    %104 = vmatpush2.msra.mxu0 0.0
    %105 = vmatprep.subr.mxu0 0.0
    %106 = vmatpush2.msra.mxu0 0.0
    %107 = vmatprep.subr.mxu0 0.0
    %108 = vmatpush2.msra.mxu0 0.0
    %109 = vmatprep.subr.mxu0 0.0
    %110 = vmatpush2.msra.mxu0 0.0
    %111 = vmatprep.subr.mxu0 0.0
    %112 = vmatpush2.msra.mxu0 0.0
    %113 = vmatprep.subr.mxu0 0.0
    %114 = vmatpush2.msra.mxu0 0.0
    %115 = vmatprep.subr.mxu0 0.0
    %116 = vmatpush2.msra.mxu0 0.0
    %117 = vmatprep.subr.mxu0 0.0
    %118 = vmatpush2.msra.mxu0 0.0
    %119 = vmatprep.subr.mxu0 0.0
    %120 = vmatpush2.msra.mxu0 0.0
    %121 = vmatprep.mubr.f32.mxu0 0.0
    %122 = vmatmul.mubr.f32.gmra.mxu0 %v55
    %v123 = vpop.f32.mrf.mxu0
    %v124 = vadd.f32 0.0, %v123
    %v125 = vpop.f32.mrf.mxu0
    %126 = vdwg.mxu0
    %v127 = vadd.f32 %v47, %v124
    %128 = vst.msk [vmem:[#allocation2] sm:$0xff] %vm53, %v127
    // Predicated region
    $region26: #{tpu_custom_call.1} parent=1 // pred_check
      %p129 = pneg %p41
    $region27: #{tpu_custom_call.1} parent=1 // pred_check_branch
      %131 = sbr.rel (%p129) target = $region29
    $region28: #{tpu_custom_call.1} parent=1 // pred_region
      %v132 = vld [vmem:[#allocation2] sm:$0xff]
      %v133 = vmul.f32 %v132, 0.17677669
      %v134 = vld [vmem:[%s2] sm:$0x1]
      %v136 = vlaneseq
      %v137 = vshrl.u32 %v136, 7
      %v138 = vsub.s32 0, %v137
      %v139 = vrot.slane %v134, %v138
      %v141 = vadd.f32 %v133, %v139
      %142 = vst.msk [vmem:[#allocation8] sm:$0xff] %vm53, %v141
    $region29: #{tpu_custom_call.1} parent=1 // pred_fallthru
      _
    // Predicated region
    $region30: #{tpu_custom_call.1} parent=1 // pred_check
      _
    $region31: #{tpu_custom_call.1} parent=1 // pred_check_branch
      %144 = sbr.rel (0) target = $region33
    $region32: #{tpu_custom_call.1} parent=1 // pred_region
      %s146 = ssub.s32 128, 128
      %147 = vsyncadd [#allocation5], %s146
      %s149 = sshll.u32 [#allocation8], 4
      %s150 = int_to_ptr.vmem [resolvable:$true] %s149
      %152 = dma.vmem_to_hbm [thread:$0]  %s150, 128, %s3, [#allocation5]
    $region33: #{tpu_custom_call.1} parent=1 // pred_fallthru
      _
    // Predicated region
    $region34: #{tpu_custom_call.1} parent=1 // pred_check
      _
    $region35: #{tpu_custom_call.1} parent=1 // pred_check_branch
      %154 = sbr.rel (0) target = $region37
    $region36: #{tpu_custom_call.1} parent=1 // pred_region
      %155 = dma.done [#allocation5], 128
    $region37: #{tpu_custom_call.1} parent=1 // pred_fallthru
      _
    %156 = vsyncpa [#allocation4], 1
    %157 = vsyncpa [#allocation7], 1
    %158 = vsyncpa [#allocation5], 1

</llo_original>
